<compile_context>
chip_gen: v5e
topology: v5e:2x2
jax: 0.10.0
libtpu: 0.0.40
codegen_flags: <defaults>
</compile_context>

<pallas_src>
import jax
import jax.numpy as jnp
from jax import lax
from jax.experimental import pallas as pl
from jax.experimental.pallas import tpu as pltpu


# ----------------------------------------------------------------------------
# Kernels
# ----------------------------------------------------------------------------
def _linear_kernel_small_n(x_ref, w_ref, o_ref, acc_ref):
    """Small-N variant: output written as a lane-dense (N, tm) slab.

    grid = (grid_m, grid_k); k (reduction) is the last axis.
      x_ref : (tm, tk)   activation tile
      w_ref : (N,  tk)   weight K-slice (N < 128, untiled)
      o_ref : (N,  tm)   transposed output tile (rows of x on the lane axis)
      acc   : (N,  tm)   f32 accumulator, resident across the K axis
    """
    k = pl.program_id(1)

    @pl.when(k == 0)
    def _():
        acc_ref[...] = jnp.zeros_like(acc_ref)

    # Contract K of both operands ("trans_b" form) on the MXU, accumulate f32.
    acc_ref[...] += lax.dot_general(
        w_ref[...],
        x_ref[...],
        dimension_numbers=(((1,), (1,)), ((), ())),
        preferred_element_type=jnp.float32,
    )

    @pl.when(k == pl.num_programs(1) - 1)
    def _():
        o_ref[...] = acc_ref[...].astype(o_ref.dtype)


def _linear_kernel_wide_n(x_ref, w_ref, o_ref, acc_ref):
    """Wide-N variant: natural (tm, tn) output layout (already lane-dense).

    grid = (grid_m, grid_n, grid_k); k (reduction) is the last axis.
      x_ref : (tm, tk)
      w_ref : (tn, tk)
      o_ref : (tm, tn)
      acc   : (tm, tn) f32
    """
    k = pl.program_id(2)

    @pl.when(k == 0)
    def _():
        acc_ref[...] = jnp.zeros_like(acc_ref)

    acc_ref[...] += lax.dot_general(
        x_ref[...],
        w_ref[...],
        dimension_numbers=(((1,), (1,)), ((), ())),  # contract K of both
        preferred_element_type=jnp.float32,
    )

    @pl.when(k == pl.num_programs(2) - 1)
    def _():
        o_ref[...] = acc_ref[...].astype(o_ref.dtype)


# ----------------------------------------------------------------------------
# Tile-size helpers
# ----------------------------------------------------------------------------
def _round_up(v, m):
    return ((v + m - 1) // m) * m


def _round_down(v, m):
    return max(m, (v // m) * m)


def _vmem_capacity_bytes():
    try:
        return int(pltpu.get_tpu_info().vmem_capacity_bytes)
    except Exception:
        return 64 << 20  # most conservative (v7x per-TC VMEM)


def _pick_tk(K, override=None, max_tk=2048):
    """K-slice size: multiple of 128 (256-friendly), prefers exact divisors."""
    if override is not None:
        return K if override >= K else max(128, _round_down(override, 128))
    if K <= max_tk:
        return K
    for cand in (2048, 1792, 1536, 1280, 1024, 768, 512, 384, 256, 128):
        if K % cand == 0:
            return cand
    return 1024  # non-divisor: wrapper zero-pads K (exact for a dot)


# ----------------------------------------------------------------------------
# Forward pass: LinearModel.forward == fc(x.view(-1, input_feature)), no bias
# ----------------------------------------------------------------------------
def linear_model_forward(x, weight, *, force_pallas=False, tm=None, tk=None):
    """x: flattens to (-1, K);  weight: (N, K) in nn.Linear convention.
    Returns (M, N) with M = x.size // K."""
    N, K = weight.shape
    compute_dtype = jnp.promote_types(x.dtype, weight.dtype)  # no silent downcast
    x2d = x.reshape(-1, K).astype(compute_dtype)               # glue: x.view(-1, K)
    w = weight.astype(compute_dtype)
    M = x2d.shape[0]
    itemsize = jnp.dtype(compute_dtype).itemsize
    out_dtype = compute_dtype

    # Tiny problems: Pallas launch / per-step overhead dominates -> XLA fuses it.
    if not force_pallas and M * K * itemsize < (1 << 20):
        return x2d @ w.T

    # --- per-generation VMEM budget ------------------------------------------
    vmem_cap = _vmem_capacity_bytes()
    vmem_budget = int(vmem_cap * 0.4)                         # buffer budget (headroom left)
    vmem_limit = max(32 << 20, min(vmem_cap * 3 // 4, vmem_cap - (16 << 20)))

    # --- K tiling (reduction axis) -------------------------------------------
    tk_eff = _pick_tk(K, override=tk)
    grid_k = pl.cdiv(K, tk_eff)
    k_pad = grid_k * tk_eff
    if k_pad != K:
        # Zero-pad K so partial K-tiles never feed garbage into the accumulator.
        x2d = jnp.pad(x2d, ((0, 0), (0, k_pad - K)))
        w = jnp.pad(w, ((0, 0), (0, k_pad - K)))

    # --- N tiling / output-layout variant ------------------------------------
    small_n = N < 128
    if small_n:
        tn_eff, grid_n = N, 1            # untiled; lane-dense via transposed slab
    else:
        tn_eff = 256 if N % 256 == 0 else 128   # 256 matches v6e/v7x MXU; 128 everywhere
        grid_n = pl.cdiv(N, tn_eff)

    # --- M tiling: bandwidth target, VMEM bound, megacore split --------------
    if tm is not None:
        tm_eff = M if tm >= M else max(128, _round_down(tm, 128))
    elif M <= 256:
        tm_eff = M                        # single full-extent block (always legal)
    else:
        # ~4 MiB of x per grid step keeps the ~0.35 us/step overhead small even
        # at v7x's 3.2 TB/s HBM.
        target_bytes = 4 << 20
        tm_eff = _round_up(max(1, target_bytes // (tk_eff * itemsize)), 128)
        # VMEM bound: 2x x-buf + 2x out-buf + f32 acc per row, plus weight bufs.
        out_cols = N if small_n else tn_eff
        per_row = 2 * tk_eff * itemsize + 2 * out_cols * itemsize + out_cols * 4
        w_bytes = 2 * (N if small_n else tn_eff) * tk_eff * itemsize
        tm_vmem = _round_down(max(128, (vmem_budget - w_bytes) // per_row), 128)
        tm_eff = min(tm_eff, tm_vmem)
        # v7x: guarantee >= 2 M-tiles so the "parallel" axis shards over both TCs.
        tm_eff = min(tm_eff, _round_up(pl.cdiv(M, 2), 128))
        tm_eff = max(tm_eff, 128)
    grid_m = pl.cdiv(M, tm_eff)

    # --- pallas_call ----------------------------------------------------------
    out_bytes = M * N * jnp.dtype(out_dtype).itemsize
    cost = pl.CostEstimate(
        flops=2 * M * K * N,
        transcendentals=0,
        bytes_accessed=(M * k_pad + N * k_pad) * itemsize
        + out_bytes * (2 if small_n else 1),  # +1 pass for the wrapper .T (small N)
    )

    if small_n:
        grid = (grid_m, grid_k)
        out_shape = jax.ShapeDtypeStruct((N, M), out_dtype)
        in_specs = [
            pl.BlockSpec((tm_eff, tk_eff), lambda i, k: (i, k)),   # x tile, pipelined
            pl.BlockSpec((N, tk_eff), lambda i, k: (0, k)),        # weight K-slice
        ]
        out_specs = pl.BlockSpec((N, tm_eff), lambda i, k: (0, i))
        scratch = [pltpu.VMEM((N, tm_eff), jnp.float32)]
        kernel = _linear_kernel_small_n
        dims = ("parallel", "arbitrary")
    else:
        grid = (grid_m, grid_n, grid_k)
        out_shape = jax.ShapeDtypeStruct((M, N), out_dtype)
        in_specs = [
            pl.BlockSpec((tm_eff, tk_eff), lambda i, j, k: (i, k)),
            pl.BlockSpec((tn_eff, tk_eff), lambda i, j, k: (j, k)),
        ]
        out_specs = pl.BlockSpec((tm_eff, tn_eff), lambda i, j, k: (i, j))
        scratch = [pltpu.VMEM((tm_eff, tn_eff), jnp.float32)]
        kernel = _linear_kernel_wide_n
        dims = ("parallel", "parallel", "arbitrary")

    out = pl.pallas_call(
        kernel,
        out_shape=out_shape,
        grid=grid,
        in_specs=in_specs,
        out_specs=out_specs,
        scratch_shapes=scratch,
        compiler_params=pltpu.CompilerParams(
            dimension_semantics=dims,
            vmem_limit_bytes=int(vmem_limit),
        ),
        cost_estimate=cost,
    )(x2d, w)

    if small_n:
        out = out.T  # (M, N); for N == 1 this is effectively a reshape
    return out


# ----------------------------------------------------------------------------
# Self-test
# ----------------------------------------------------------------------------
if __name__ == "__main__":
    key = jax.random.PRNGKey(0)
    kx, kw, kx2, kx3, kw3 = jax.random.split(key, 5)

    # --- Case 1: the module's toy shape (x.view(-1, 32) -> (8, 32)) ----------
    input_feature, output_feature = 32, 1
    bound = 1.0 / (input_feature ** 0.5)
    weight = jax.random.uniform(
        kw, (output_feature, input_feature),
        minval=-bound, maxval=bound, dtype=jnp.float32)
    x_small = jax.random.normal(kx, (2, 4, input_feature), dtype=jnp.float32)
    out_small = jax.block_until_ready(
        linear_model_forward(x_small, weight, force_pallas=True))
    ref_small = x_small.reshape(-1, input_feature) @ weight.T
    assert out_small.shape == (8, output_feature), out_small.shape
    assert jnp.allclose(out_small, ref_small, atol=1e-5, rtol=1e-5), \
        "small-case mismatch vs reference"

    # --- Case 2: multi-tile M (grid_m > 1, partial last tile), small N -------
    x_big = jax.random.normal(kx2, (40, 8, input_feature), dtype=jnp.float32)  # M = 320
    out_big = jax.block_until_ready(
        linear_model_forward(x_big, weight, force_pallas=True, tm=128))
    ref_big = x_big.reshape(-1, input_feature) @ weight.T
    assert out_big.shape == (320, output_feature), out_big.shape
    assert jnp.allclose(out_big, ref_big, atol=1e-5, rtol=1e-5), \
        "tiled-M mismatch vs reference"

    # --- Case 3: wide N (natural-layout output) + K-axis accumulator ---------
    in3, out3 = 256, 256
    w3 = (jax.random.normal(kw3, (out3, in3), dtype=jnp.float32)
          * (1.0 / in3 ** 0.5))
    x3 = jax.random.normal(kx3, (4, 64, in3), dtype=jnp.float32)               # M = 256
    out_wide = jax.block_until_ready(
        linear_model_forward(x3, w3, force_pallas=True, tk=128))               # grid_k = 2
    ref_wide = x3.reshape(-1, in3) @ w3.T
    assert out_wide.shape == (256, out3), out_wide.shape
    assert jnp.allclose(out_wide, ref_wide, atol=1e-3, rtol=1e-3), \
        "wide-N / K-tiled mismatch vs reference"

    # --- Auto dispatch (tiny problem -> plain XLA dot) still matches ---------
    out_auto = jax.block_until_ready(linear_model_forward(x_small, weight))
    assert jnp.allclose(out_auto, ref_small, atol=1e-5, rtol=1e-5)

    print("KERNEL_OK")
</pallas_src>

<mosaic_0001>
module attributes {stable_mosaic.version = 11 : i64} {
  func.func @_linear_kernel_small_n(%arg0: i32, %arg1: i32, %arg2: memref<8x32xf32, #tpu.memory_space<vmem>>, %arg3: memref<1x32xf32, #tpu.memory_space<vmem>>, %arg4: memref<1x8xf32, #tpu.memory_space<vmem>>, %arg5: memref<1x8xf32, #tpu.memory_space<vmem>>) attributes {dimension_semantics = [#tpu.dimension_semantics<parallel>, #tpu.dimension_semantics<arbitrary>], iteration_bounds = array<i64: 1, 1>, scalar_prefetch = 0 : i64, scratch_operands = 1 : i64, tpu.core_type = #tpu.core_type<tc>, window_params = [{transform_indices = @transform_0, window_bounds = array<i64: 8, 32>}, {transform_indices = @transform_1, window_bounds = array<i64: 1, 32>}, {transform_indices = @transform_2, window_bounds = array<i64: 1, 8>}]} {
    %c0_i32 = arith.constant 0 : i32
    %0 = arith.cmpi eq, %arg1, %c0_i32 : i32
    %1 = arith.extui %0 : i1 to i32
    %c0_i32_0 = arith.constant 0 : i32
    %2 = arith.cmpi ne, %1, %c0_i32_0 : i32
    scf.if %2 {
      %cst_10 = arith.constant 0.000000e+00 : f32
      %12 = vector.broadcast %cst_10 : f32 to vector<1x8xf32>
      %c0_11 = arith.constant 0 : index
      %c0_12 = arith.constant 0 : index
      %13 = vector.load %arg5[%c0_11, %c0_12] : memref<1x8xf32, #tpu.memory_space<vmem>>, vector<1x8xf32>
      tpu.vector_store %arg5[%c0_11, %c0_12], %12 {strides = array<i32>} : memref<1x8xf32, #tpu.memory_space<vmem>>, vector<1x8xf32>,
    } else {
    }
    %c0 = arith.constant 0 : index
    %c0_1 = arith.constant 0 : index
    %3 = vector.load %arg5[%c0, %c0_1] : memref<1x8xf32, #tpu.memory_space<vmem>>, vector<1x8xf32>
    %c0_2 = arith.constant 0 : index
    %c0_3 = arith.constant 0 : index
    %4 = vector.load %arg3[%c0_2, %c0_3] : memref<1x32xf32, #tpu.memory_space<vmem>>, vector<1x32xf32>
    %c0_4 = arith.constant 0 : index
    %c0_5 = arith.constant 0 : index
    %5 = vector.load %arg2[%c0_4, %c0_5] : memref<8x32xf32, #tpu.memory_space<vmem>>, vector<8x32xf32>
    %cst = arith.constant dense<0.000000e+00> : vector<1x8xf32>
    %6 = tpu.matmul %4, %5, %cst {dimension_numbers = #tpu.dot_dimension_numbers<[1], [1], [0], [0], [0, 0, 1, 0], [], []>} : vector<1x32xf32>, vector<8x32xf32>, vector<1x8xf32> -> vector<1x8xf32>
    %7 = arith.addf %3, %6 : vector<1x8xf32>
    %c0_6 = arith.constant 0 : index
    %c0_7 = arith.constant 0 : index
    %8 = vector.load %arg5[%c0_6, %c0_7] : memref<1x8xf32, #tpu.memory_space<vmem>>, vector<1x8xf32>
    tpu.vector_store %arg5[%c0_6, %c0_7], %7 {strides = array<i32>} : memref<1x8xf32, #tpu.memory_space<vmem>>, vector<1x8xf32>,
    %c0_i32_8 = arith.constant 0 : i32
    %9 = arith.cmpi eq, %arg1, %c0_i32_8 : i32
    %10 = arith.extui %9 : i1 to i32
    %c0_i32_9 = arith.constant 0 : i32
    %11 = arith.cmpi ne, %10, %c0_i32_9 : i32
    scf.if %11 {
      %c0_10 = arith.constant 0 : index
      %c0_11 = arith.constant 0 : index
      %12 = vector.load %arg5[%c0_10, %c0_11] : memref<1x8xf32, #tpu.memory_space<vmem>>, vector<1x8xf32>
      %c0_12 = arith.constant 0 : index
      %c0_13 = arith.constant 0 : index
      %13 = vector.load %arg4[%c0_12, %c0_13] : memref<1x8xf32, #tpu.memory_space<vmem>>, vector<1x8xf32>
      tpu.vector_store %arg4[%c0_12, %c0_13], %12 {strides = array<i32>} : memref<1x8xf32, #tpu.memory_space<vmem>>, vector<1x8xf32>,
    } else {
    }
    return
  }
  func.func @transform_0(%arg0: i32, %arg1: i32) -> (i32, i32) {
    %c0_i32 = arith.constant 0 : i32
    return %arg0, %arg1 : i32, i32
  }
  func.func @transform_1(%arg0: i32, %arg1: i32) -> (i32, i32) {
    %c0_i32 = arith.constant 0 : i32
    %c0_i32_0 = arith.constant 0 : i32
    return %c0_i32, %arg1 : i32, i32
  }
  func.func @transform_2(%arg0: i32, %arg1: i32) -> (i32, i32) {
    %c0_i32 = arith.constant 0 : i32
    %c0_i32_0 = arith.constant 0 : i32
    return %c0_i32, %arg0 : i32, i32
  }
}

</mosaic_0001>

<llo_original>
// kernel: tpu_custom_call.1
$region0: #{tpu_custom_call.1}
  #allocation0 [shape = 'u32[]', space=smem, size = 0x4, offset = 0x4, fixed_abs, tag = 'smem constant byte address 0x4 - core index']
  #allocation1 [shape = 'u32[72,128]{1,0:T(1,128)}', space=vmem, size = 0x9000, scoped, tag = 'internal scratch']
  #allocation2 [shape = 'f32[1,8]{1,0:T(1,128)}', space=vmem, size = 0x200, scoped, tag = 'scratch operand']
  %s0 = inlined_call_operand.hbm [shape: f32[8,32], index: 0, kind: input, shape index: {}]
  %s1 = inlined_call_operand.hbm [shape: f32[1,32], index: 1, kind: input, shape index: {}]
  %s2 = inlined_call_operand.hbm [shape: f32[1,8], index: 2, kind: output, shape index: {}]
  %s3 = sld [smem:[#allocation0]]
  $region34: #{tpu_custom_call.1} parent=0
    _
  %s5 = ssub.s32 1, %s3
  %s6 = scalar_select 0, %s5, %s3
  $region1: #{tpu_custom_call.1} parent=0
    #allocation3 [shape = 'u8[4096]{0}', space=vmem, size = 0x1000, scoped, tag = 'input window, operand 0, single buffered']
    #allocation4 [shape = 's32[1]{0}', space=sflag, size = 0x4, scoped, tag = 'scoped memory for tpu_custom_call.1']
    #allocation5 [shape = 's32[1]{0}', space=sflag, size = 0x4, scoped, tag = 'scoped memory for tpu_custom_call.1']
    #allocation6 [shape = 'u8[512]{0}', space=vmem, size = 0x400, scoped, tag = 'input window, operand 1, single buffered']
    #allocation7 [shape = 's32[1]{0}', space=sflag, size = 0x4, scoped, tag = 'scoped memory for tpu_custom_call.1']
    #allocation8 [shape = 'u8[512]{0}', space=vmem, size = 0x400, scoped, tag = 'output window, operand 0, single buffered']
    %7 = vsyncpa [#allocation4], 0
    %8 = vsyncpa [#allocation7], 0
    %9 = vsyncpa [#allocation5], 0
    // Predicated region
    $region2: #{tpu_custom_call.1} parent=1 // pred_check
      _
    $region3: #{tpu_custom_call.1} parent=1 // pred_check_branch
      %11 = sbr.rel (0) target = $region5
    $region4: #{tpu_custom_call.1} parent=1 // pred_region
      %13 = vsyncadd [#allocation4], 0
      %s15 = sshll.u32 %s0, 4
      %s16 = int_to_ptr.hbm [resolvable:$true] %s15
      %s17 = sshll.u32 [#allocation3], 4
      %s18 = int_to_ptr.vmem [resolvable:$true] %s17
      %20 = dma.hbm_to_vmem [thread:$0]  %s16, 128, %s18, [#allocation4]
    $region5: #{tpu_custom_call.1} parent=1 // pred_fallthru
      _
    // Predicated region
    $region6: #{tpu_custom_call.1} parent=1 // pred_check
      _
    $region7: #{tpu_custom_call.1} parent=1 // pred_check_branch
      %22 = sbr.rel (0) target = $region9
    $region8: #{tpu_custom_call.1} parent=1 // pred_region
      %24 = vsyncadd [#allocation7], 0
      %s26 = sshll.u32 %s1, 4
      %s27 = int_to_ptr.hbm [resolvable:$true] %s26
      %s28 = sshll.u32 [#allocation6], 4
      %s29 = int_to_ptr.vmem [resolvable:$true] %s28
      %31 = dma.hbm_to_vmem [thread:$0]  %s27, 16, %s29, [#allocation7]
    $region9: #{tpu_custom_call.1} parent=1 // pred_fallthru
      _
    // Predicated region
    $region10: #{tpu_custom_call.1} parent=1 // pred_check
      _
    $region11: #{tpu_custom_call.1} parent=1 // pred_check_branch
      %33 = sbr.rel (0) target = $region13
    $region12: #{tpu_custom_call.1} parent=1 // pred_region
      %35 = dma.done [#allocation4], 128
    $region13: #{tpu_custom_call.1} parent=1 // pred_fallthru
      _
    // Predicated region
    $region14: #{tpu_custom_call.1} parent=1 // pred_check
      _
    $region15: #{tpu_custom_call.1} parent=1 // pred_check_branch
      %37 = sbr.rel (0) target = $region17
    $region16: #{tpu_custom_call.1} parent=1 // pred_region
      %39 = dma.done [#allocation7], 16
    $region17: #{tpu_custom_call.1} parent=1 // pred_fallthru
      _
    %p40 = scmp.eq.s32.totalorder 0, 0
    // Predicated region
    $region18: #{tpu_custom_call.1} parent=1 // pred_check
      %p41 = pneg %p40
    $region19: #{tpu_custom_call.1} parent=1 // pred_check_branch
      %43 = sbr.rel (%p41) target = $region21
    $region20: #{tpu_custom_call.1} parent=1 // pred_region
      %vm44 = vcmask 57344
      %45 = vst.msk [vmem:[#allocation2] sm:$0x1] %vm44, 0.0
    $region21: #{tpu_custom_call.1} parent=1 // pred_fallthru
      _
    %v46 = vld [vmem:[#allocation2] sm:$0x1]
    %v47 = vld [vmem:[#allocation6] sm:$0x1]
    %v48 = vld [vmem:[#allocation3] sm:$0xff]
    %vm49 = vcmask 261120
    %v51 = vsel %vm49, %v47, 0
    %v54 = vsel %vm49, %v48, 0
    %56 = vmatpush.xpose.msra.mxu0 0.0
    %57 = vmatpush.xpose.msra.mxu0 0.0
    %58 = vmatpush.xpose.msra.mxu0 0.0
    %59 = vmatpush.xpose.msra.mxu0 0.0
    %60 = vmatpush.xpose.msra.mxu0 0.0
    %61 = vmatpush.xpose.msra.mxu0 0.0
    %62 = vmatpush.xpose.msra.mxu0 0.0
    %63 = vmatpush.xpose.msra.mxu0 0.0
    %64 = vmatpush.xpose.msra.mxu0 0.0
    %65 = vmatpush.xpose.msra.mxu0 0.0
    %66 = vmatpush.xpose.msra.mxu0 0.0
    %67 = vmatpush.xpose.msra.mxu0 0.0
    %68 = vmatpush.xpose.msra.mxu0 0.0
    %69 = vmatpush.xpose.msra.mxu0 0.0
    %70 = vmatpush.xpose.msra.mxu0 0.0
    %71 = vmatpush.xpose.msra.mxu0 %v54
    %72 = vmatmul.f32.gmra.mxu0 %v51
    %v73 = vpop.f32.mrf.mxu0
    %v74 = vadd.f32 0.0, %v73
    %75 = vdwg.mxu0
    %v76 = vadd.f32 %v46, %v74
    %vm77 = vcmask 57344
    %78 = vst.msk [vmem:[#allocation2] sm:$0x1] %vm77, %v76
    // Predicated region
    $region22: #{tpu_custom_call.1} parent=1 // pred_check
      %p79 = pneg %p40
    $region23: #{tpu_custom_call.1} parent=1 // pred_check_branch
      %81 = sbr.rel (%p79) target = $region25
    $region24: #{tpu_custom_call.1} parent=1 // pred_region
      %v82 = vld [vmem:[#allocation2] sm:$0x1]
      %83 = vst.msk [vmem:[#allocation8] sm:$0x1] %vm77, %v82
    $region25: #{tpu_custom_call.1} parent=1 // pred_fallthru
      _
    // Predicated region
    $region26: #{tpu_custom_call.1} parent=1 // pred_check
      _
    $region27: #{tpu_custom_call.1} parent=1 // pred_check_branch
      %85 = sbr.rel (0) target = $region29
    $region28: #{tpu_custom_call.1} parent=1 // pred_region
      %87 = vsyncadd [#allocation5], 0
      %s89 = sshll.u32 [#allocation8], 4
      %s90 = int_to_ptr.vmem [resolvable:$true] %s89
      %s91 = sshll.u32 %s2, 4
      %s92 = int_to_ptr.hbm [resolvable:$true] %s91
      %94 = dma.vmem_to_hbm [thread:$0]  %s90, 16, %s92, [#allocation5]
    $region29: #{tpu_custom_call.1} parent=1 // pred_fallthru
      _
    // Predicated region
    $region30: #{tpu_custom_call.1} parent=1 // pred_check
      _
    $region31: #{tpu_custom_call.1} parent=1 // pred_check_branch
      %96 = sbr.rel (0) target = $region33
    $region32: #{tpu_custom_call.1} parent=1 // pred_region
      %98 = dma.done [#allocation5], 16
    $region33: #{tpu_custom_call.1} parent=1 // pred_fallthru
      _
    %99 = vsyncpa [#allocation4], 1
    %100 = vsyncpa [#allocation7], 1
    %101 = vsyncpa [#allocation5], 1

</llo_original>
